<compile_context>
chip_gen: v6e
topology: v6e:2x2x1
jax: 0.10.0
libtpu: 0.0.40
codegen_flags: <defaults>
</compile_context>

<pallas_src>
import math

import jax
import jax.numpy as jnp
from jax.experimental import pallas as pl
from jax.experimental.pallas import tpu as pltpu

EPS = 1e-5


# ---------------------------------------------------------------------------
# Pallas kernel: relu(BN(x)) -> 2x2 avg pool -> 1x1 conv, one tile of pixels
# ---------------------------------------------------------------------------
def _transition_kernel(x_ref, p_ref, w_ref, s_ref, b_ref, o_ref):
    # x_ref: (TRW, Cin)      bf16  pixel tile (TRW = whole image rows * W)
    # p_ref: (TRW//4, TRW)   bf16  2x2 average-pooling selection matrix (0.25 entries)
    # w_ref: (Cin, Cout)     bf16  1x1 conv weight
    # s_ref, b_ref: (1, Cin) f32   folded BatchNorm scale / shift
    # o_ref: (TRW//4, Cout)  f32   pooled conv output tile
    xv = x_ref[...].astype(jnp.float32)
    xv = jnp.maximum(xv * s_ref[...] + b_ref[...], 0.0)          # BN + ReLU (f32, VPU)
    pooled = jnp.dot(p_ref[...], xv.astype(jnp.bfloat16),
                     preferred_element_type=jnp.float32)          # 2x2 avg pool (MXU)
    y = jnp.dot(pooled.astype(jnp.bfloat16), w_ref[...],
                preferred_element_type=jnp.float32)               # 1x1 conv (MXU)
    o_ref[...] = y.astype(o_ref.dtype)


def _pick_block_rows(nh, w, max_pixels=1024):
    """Pick TR = image rows per block: even, divides N*H, TR*W a multiple of 32.

    Prefers the largest tile <= max_pixels pixel-rows that still yields >= 2 grid
    steps (so both v7x TensorCores get work and the pipeline has >1 stage).
    """
    cands = [tr for tr in range(2, nh + 1, 2)
             if nh % tr == 0 and (tr * w) % 32 == 0]
    if not cands:
        raise ValueError(f"cannot tile N*H={nh} image rows with W={w}")
    small = [tr for tr in cands if tr * w <= max_pixels]
    if not small:
        return min(cands)
    multi = [tr for tr in small if nh // tr >= 2]
    return max(multi) if multi else max(small)


# ---------------------------------------------------------------------------
# Wrapper: NCHW in / NCHW out, mirroring Transition.forward
# ---------------------------------------------------------------------------
def transition_forward(x_nchw, params):
    N, Cin, H, W = x_nchw.shape
    assert H % 2 == 0 and W % 2 == 0, "avg_pool2d(2) path here assumes even H, W"
    # TODO(synk): odd H/W (PyTorch floors the pooled size) and ragged pixel tiles
    # (N*H not divisible into even-row blocks) are not handled.
    Cout = params['conv_w'].shape[0]

    # Fold inference-mode BatchNorm (running stats + affine) into scale/shift.
    scale = params['bn_gamma'] / jnp.sqrt(params['bn_var'].astype(jnp.float32) + EPS)
    shift = params['bn_beta'] - params['bn_mean'] * scale
    scale = scale.reshape(1, Cin).astype(jnp.float32)
    shift = shift.reshape(1, Cin).astype(jnp.float32)

    # NCHW -> NHWC pixel slab (channels on lanes), cast to bf16 once.
    x2d = jnp.transpose(x_nchw, (0, 2, 3, 1)).astype(jnp.bfloat16).reshape(N * H * W, Cin)
    w = params['conv_w'].reshape(Cout, Cin).T.astype(jnp.bfloat16)        # (Cin, Cout)

    TR = _pick_block_rows(N * H, W)        # whole image rows per block (even)
    TRW = TR * W                           # pixel-rows per block (multiple of 32)
    M = N * H * W
    n_blocks = M // TRW

    # 2x2 average pooling as a matmul: pooled = P @ pixels.
    # Row r of a block (image row r//W, column r%W) belongs to pooling window
    # (r // (2W)) * (W/2) + (r % W)//2; each window row of P holds four 0.25 entries.
    r = jnp.arange(TRW)
    win = (r // (2 * W)) * (W // 2) + (r % W) // 2
    P = jnp.where(win[None, :] == jnp.arange(TRW // 4)[:, None],
                  0.25, 0.0).astype(jnp.bfloat16)

    # Explicit scoped-VMEM budget (block footprint x2 for double buffering + headroom),
    # safe on v5e's 16 MiB default and v7x's 64 MiB physical VMEM.
    blk_bytes = (TRW * Cin * 2 + (TRW // 4) * TRW * 2 + Cin * Cout * 2
                 + 2 * Cin * 4 + (TRW // 4) * Cout * 4)
    vmem_limit = int(min(64 * 1024 * 1024,
                         max(4 * 1024 * 1024, 2 * blk_bytes + 2 * 1024 * 1024)))

    y2d = pl.pallas_call(
        _transition_kernel,
        out_shape=jax.ShapeDtypeStruct((M // 4, Cout), jnp.float32),
        grid=(n_blocks,),
        in_specs=[
            pl.BlockSpec((TRW, Cin), lambda i: (i, 0)),        # pixel tile (pipelined)
            pl.BlockSpec((TRW // 4, TRW), lambda i: (0, 0)),   # pooling matrix (resident)
            pl.BlockSpec((Cin, Cout), lambda i: (0, 0)),       # conv weight (resident)
            pl.BlockSpec((1, Cin), lambda i: (0, 0)),          # BN scale
            pl.BlockSpec((1, Cin), lambda i: (0, 0)),          # BN shift
        ],
        out_specs=pl.BlockSpec((TRW // 4, Cout), lambda i: (i, 0)),
        compiler_params=pltpu.CompilerParams(
            dimension_semantics=("parallel",),
            vmem_limit_bytes=vmem_limit,
        ),
    )(x2d, P, w, scale, shift)

    # (N * H/2 * W/2, Cout) -> NCHW
    return jnp.transpose(y2d.reshape(N, H // 2, W // 2, Cout), (0, 3, 1, 2))


# ---------------------------------------------------------------------------
# Deterministic parameters + pure-JAX reference (PyTorch semantics, f32)
# ---------------------------------------------------------------------------
def make_transition_params(key, in_planes, out_planes):
    k1, k2, k3, k4, k5 = jax.random.split(key, 5)
    return {
        'bn_gamma': 1.0 + 0.1 * jax.random.normal(k1, (in_planes,), jnp.float32),
        'bn_beta': 0.1 * jax.random.normal(k2, (in_planes,), jnp.float32),
        'bn_mean': 0.1 * jax.random.normal(k3, (in_planes,), jnp.float32),
        'bn_var': 1.0 + 0.1 * jax.random.uniform(k4, (in_planes,), jnp.float32),
        'conv_w': jax.random.normal(k5, (out_planes, in_planes, 1, 1), jnp.float32)
                  * (1.0 / math.sqrt(in_planes)),
    }


def transition_reference(x, p):
    scale = p['bn_gamma'] / jnp.sqrt(p['bn_var'] + EPS)
    shift = p['bn_beta'] - p['bn_mean'] * scale
    h = jnp.maximum(x * scale[None, :, None, None] + shift[None, :, None, None], 0.0)
    w = p['conv_w'].reshape(p['conv_w'].shape[0], -1)          # (Cout, Cin)
    h = jnp.einsum('nchw,oc->nohw', h, w)
    N, C, H, W = h.shape
    return h.reshape(N, C, H // 2, 2, W // 2, 2).mean(axis=(3, 5))


# ---------------------------------------------------------------------------
if __name__ == "__main__":
    key = jax.random.PRNGKey(0)
    kx, kp = jax.random.split(key)

    # DenseNet-121 trans1-like channel sizes (lane-dense 128-wide output), small spatial.
    N, Cin, Cout, H, W = 2, 256, 128, 16, 16
    x = jax.random.normal(kx, (N, Cin, H, W), jnp.float32)
    params = make_transition_params(kp, Cin, Cout)

    fwd = jax.jit(transition_forward)
    out = jax.block_until_ready(fwd(x, params))
    assert out.shape == (N, Cout, H // 2, W // 2), out.shape
    assert bool(jnp.all(jnp.isfinite(out)))

    ref = transition_reference(x, params)
    err = float(jnp.max(jnp.abs(out - ref)))
    assert err < 5e-2, f"max abs error vs reference too large: {err}"

    print("KERNEL_OK")
</pallas_src>

<mosaic_0001>
module attributes {stable_mosaic.version = 11 : i64} {
  func.func @_transition_kernel(%arg0: i32, %arg1: memref<256x256xbf16, #tpu.memory_space<vmem>>, %arg2: memref<64x256xbf16, #tpu.memory_space<vmem>>, %arg3: memref<256x128xbf16, #tpu.memory_space<vmem>>, %arg4: memref<1x256xf32, #tpu.memory_space<vmem>>, %arg5: memref<1x256xf32, #tpu.memory_space<vmem>>, %arg6: memref<64x128xf32, #tpu.memory_space<vmem>>) attributes {dimension_semantics = [#tpu.dimension_semantics<parallel>], iteration_bounds = array<i64: 2>, scalar_prefetch = 0 : i64, scratch_operands = 0 : i64, tpu.core_type = #tpu.core_type<tc>, window_params = [{transform_indices = @transform_0, window_bounds = array<i64: 256, 256>}, {pipeline_mode = #tpu.pipeline_mode<synchronous>, transform_indices = @transform_1, window_bounds = array<i64: 64, 256>}, {pipeline_mode = #tpu.pipeline_mode<synchronous>, transform_indices = @transform_2, window_bounds = array<i64: 256, 128>}, {pipeline_mode = #tpu.pipeline_mode<synchronous>, transform_indices = @transform_3, window_bounds = array<i64: 1, 256>}, {pipeline_mode = #tpu.pipeline_mode<synchronous>, transform_indices = @transform_4, window_bounds = array<i64: 1, 256>}, {transform_indices = @transform_5, window_bounds = array<i64: 64, 128>}]} {
    %c0 = arith.constant 0 : index
    %c0_0 = arith.constant 0 : index
    %0 = vector.load %arg1[%c0, %c0_0] : memref<256x256xbf16, #tpu.memory_space<vmem>>, vector<256x256xbf16>
    %1 = arith.extf %0 : vector<256x256xbf16> to vector<256x256xf32>
    %c0_1 = arith.constant 0 : index
    %c0_2 = arith.constant 0 : index
    %2 = vector.load %arg4[%c0_1, %c0_2] : memref<1x256xf32, #tpu.memory_space<vmem>>, vector<1x256xf32>
    %3 = vector.broadcast %2 : vector<1x256xf32> to vector<256x256xf32>
    %4 = arith.mulf %1, %3 : vector<256x256xf32>
    %c0_3 = arith.constant 0 : index
    %c0_4 = arith.constant 0 : index
    %5 = vector.load %arg5[%c0_3, %c0_4] : memref<1x256xf32, #tpu.memory_space<vmem>>, vector<1x256xf32>
    %6 = vector.broadcast %5 : vector<1x256xf32> to vector<256x256xf32>
    %7 = arith.addf %4, %6 : vector<256x256xf32>
    %cst = arith.constant 0.000000e+00 : f32
    %8 = vector.broadcast %cst : f32 to vector<256x256xf32>
    %9 = arith.maximumf %7, %8 : vector<256x256xf32>
    %c0_5 = arith.constant 0 : index
    %c0_6 = arith.constant 0 : index
    %10 = vector.load %arg2[%c0_5, %c0_6] : memref<64x256xbf16, #tpu.memory_space<vmem>>, vector<64x256xbf16>
    %11 = arith.truncf %9 : vector<256x256xf32> to vector<256x256xbf16>
    %cst_7 = arith.constant dense<0.000000e+00> : vector<64x256xf32>
    %12 = tpu.matmul %10, %11, %cst_7 {dimension_numbers = #tpu.dot_dimension_numbers<[1], [0], [0], [1], [0, 0, 1, 1], [], []>} : vector<64x256xbf16>, vector<256x256xbf16>, vector<64x256xf32> -> vector<64x256xf32>
    %13 = arith.truncf %12 : vector<64x256xf32> to vector<64x256xbf16>
    %c0_8 = arith.constant 0 : index
    %c0_9 = arith.constant 0 : index
    %14 = vector.load %arg3[%c0_8, %c0_9] : memref<256x128xbf16, #tpu.memory_space<vmem>>, vector<256x128xbf16>
    %cst_10 = arith.constant dense<0.000000e+00> : vector<64x128xf32>
    %15 = tpu.matmul %13, %14, %cst_10 {dimension_numbers = #tpu.dot_dimension_numbers<[1], [0], [0], [1], [0, 0, 1, 1], [], []>} : vector<64x256xbf16>, vector<256x128xbf16>, vector<64x128xf32> -> vector<64x128xf32>
    %c0_11 = arith.constant 0 : index
    %c0_12 = arith.constant 0 : index
    %16 = vector.load %arg6[%c0_11, %c0_12] : memref<64x128xf32, #tpu.memory_space<vmem>>, vector<64x128xf32>
    tpu.vector_store %arg6[%c0_11, %c0_12], %15 {strides = array<i32>} : memref<64x128xf32, #tpu.memory_space<vmem>>, vector<64x128xf32>,
    return
  }
  func.func @transform_0(%arg0: i32) -> (i32, i32) {
    %c0_i32 = arith.constant 0 : i32
    %c0_i32_0 = arith.constant 0 : i32
    return %arg0, %c0_i32 : i32, i32
  }
  func.func @transform_1(%arg0: i32) -> (i32, i32) {
    %c0_i32 = arith.constant 0 : i32
    %c0_i32_0 = arith.constant 0 : i32
    %c0_i32_1 = arith.constant 0 : i32
    return %c0_i32, %c0_i32_0 : i32, i32
  }
  func.func @transform_2(%arg0: i32) -> (i32, i32) {
    %c0_i32 = arith.constant 0 : i32
    %c0_i32_0 = arith.constant 0 : i32
    %c0_i32_1 = arith.constant 0 : i32
    return %c0_i32, %c0_i32_0 : i32, i32
  }
  func.func @transform_3(%arg0: i32) -> (i32, i32) {
    %c0_i32 = arith.constant 0 : i32
    %c0_i32_0 = arith.constant 0 : i32
    %c0_i32_1 = arith.constant 0 : i32
    return %c0_i32, %c0_i32_0 : i32, i32
  }
  func.func @transform_4(%arg0: i32) -> (i32, i32) {
    %c0_i32 = arith.constant 0 : i32
    %c0_i32_0 = arith.constant 0 : i32
    %c0_i32_1 = arith.constant 0 : i32
    return %c0_i32, %c0_i32_0 : i32, i32
  }
  func.func @transform_5(%arg0: i32) -> (i32, i32) {
    %c0_i32 = arith.constant 0 : i32
    %c0_i32_0 = arith.constant 0 : i32
    return %arg0, %c0_i32 : i32, i32
  }
}

</mosaic_0001>

<llo_original>
// kernel: transition_forward.1
$region0: #{transition_forward.1}
  #allocation0 [shape = 'u32[]', space=smem, size = 0x4, offset = 0x4, fixed_abs, tag = 'smem constant byte address 0x4 - core index']
  #allocation1 [shape = 'u32[144,128]{1,0:T(1,128)}', space=vmem, size = 0x12000, scoped, tag = 'internal scratch']
  %s0 = inlined_call_operand.vmem [shape: bf16[512,256], index: 0, kind: input, shape index: {}]
  %s1 = inlined_call_operand.vmem [shape: bf16[64,256], index: 1, kind: input, shape index: {}]
  %s2 = inlined_call_operand.vmem [shape: bf16[256,128], index: 2, kind: input, shape index: {}]
  %s3 = inlined_call_operand.vmem [shape: f32[1,256], index: 3, kind: input, shape index: {}]
  %s4 = inlined_call_operand.vmem [shape: f32[1,256], index: 4, kind: input, shape index: {}]
  %s5 = inlined_call_operand.hbm [shape: f32[128,128], index: 5, kind: output, shape index: {}]
  %s6 = sld [smem:[#allocation0]]
  $region53: #{transition_forward.1} parent=0
    _
  %s8 = ssub.s32 1, %s6
  %s9 = scalar_select 0, %s8, %s6
  $region1: #{transition_forward.1} parent=0
    #allocation2 [shape = 'u8[65536]{0}', space=vmem, size = 0x10000, scoped, tag = 'output window, operand 0']
    #allocation3 [shape = 's32[2]{0}', space=sflag, size = 0x8, scoped, tag = 'scoped memory for transition_forward.1']
    %10 = vsyncpa [#allocation3], 0
    %s11 = scalar_lea.sflag [#allocation3], 1
    %12 = vsyncpa %s11, 0
    loop: start=0, step=1, limit=4
    $region2: #{transition_forward.1} parent=1 // loop_pre_header
      _
    $region3: #{transition_forward.1} parent=1 // loop_header
      %s14 = sphi 0, %s18
      %p15 = scmp.ge.s32.totalorder %s14, 4
      %s24 = sphi 0, %s26
      %s27 = sphi 0, %s24
      %s28 = sphi 0, %s27
      %s44 = sphi 0, %s28
      %s48 = sphi 0, %s48
      %s50 = sphi 0, %s48
      %s51 = sphi 0, %s50
      %s65 = sphi 0, %s51
      %s69 = sphi 0, %s69
      %s71 = sphi 0, %s69
      %s72 = sphi 0, %s71
      %s86 = sphi 0, %s72
      %s90 = sphi 0, %s90
      %s92 = sphi 0, %s90
      %s93 = sphi 0, %s92
      %s107 = sphi 0, %s93
      %s111 = sphi 0, %s111
      %s113 = sphi 0, %s111
      %s114 = sphi 0, %s113
      %s128 = sphi 0, %s114
      %s134 = sphi 0, %s136
      %s137 = sphi 0, %s134
      %s138 = sphi 0, %s137
      %s154 = sphi 0, %s138
    $region4: #{transition_forward.1} parent=1 // loop_header_branch
      %17 = sbr.rel (%p15) target = $region8
    $region5: #{transition_forward.1} parent=1 // loop_body
      %s19 = ssub.s32 %s14, 1
      %s20 = ssub.s32 %s14, 2
      %s21 = sadd.s32 %s14, 1
      %s22 = ssub.s32 %s14, %s21
      %p23 = scmp.eq.s32.totalorder %s22, 0
      %s25 = sadd.s32 %s24, 1
      %s26 = scalar_select %p23, %s24, %s25
      %p29 = pneg %p23
      %p30 = scmp.eq.s32.totalorder %s14, 1
      %p31 = por %p29, %p30
      %p32 = scmp.ne.s32.totalorder %s24, %s27
      %p33 = scmp.eq.s32.totalorder %s14, 0
      %p34 = por %p32, %p33
      %p35 = scmp.ne.s32.totalorder %s24, %s27
      %p36 = scmp.eq.s32.totalorder %s19, 1
      %p37 = por %p35, %p36
      %p38 = scmp.ne.s32.totalorder %s27, %s28
      %p39 = scmp.eq.s32.totalorder %s19, 0
      %p40 = por %p38, %p39
      %p41 = scmp.ne.s32.totalorder %s27, %s28
      %p42 = scmp.eq.s32.totalorder %s20, 1
      %p43 = por %p41, %p42
      %p45 = scmp.ne.s32.totalorder %s28, %s44
      %p46 = scmp.eq.s32.totalorder %s20, 0
      %p47 = por %p45, %p46
      %s49 = sadd.s32 %s48, 1
      %p52 = scmp.eq.s32.totalorder %s14, 1
      %p53 = scmp.ne.s32.totalorder %s48, %s50
      %p54 = scmp.eq.s32.totalorder %s14, 0
      %p55 = por %p53, %p54
      %p56 = scmp.ne.s32.totalorder %s48, %s50
      %p57 = scmp.eq.s32.totalorder %s19, 1
      %p58 = por %p56, %p57
      %p59 = scmp.ne.s32.totalorder %s50, %s51
      %p60 = scmp.eq.s32.totalorder %s19, 0
      %p61 = por %p59, %p60
      %p62 = scmp.ne.s32.totalorder %s50, %s51
      %p63 = scmp.eq.s32.totalorder %s20, 1
      %p64 = por %p62, %p63
      %p66 = scmp.ne.s32.totalorder %s51, %s65
      %p67 = scmp.eq.s32.totalorder %s20, 0
      %p68 = por %p66, %p67
      %s70 = sadd.s32 %s69, 1
      %p73 = scmp.eq.s32.totalorder %s14, 1
      %p74 = scmp.ne.s32.totalorder %s69, %s71
      %p75 = scmp.eq.s32.totalorder %s14, 0
      %p76 = por %p74, %p75
      %p77 = scmp.ne.s32.totalorder %s69, %s71
      %p78 = scmp.eq.s32.totalorder %s19, 1
      %p79 = por %p77, %p78
      %p80 = scmp.ne.s32.totalorder %s71, %s72
      %p81 = scmp.eq.s32.totalorder %s19, 0
      %p82 = por %p80, %p81
      %p83 = scmp.ne.s32.totalorder %s71, %s72
      %p84 = scmp.eq.s32.totalorder %s20, 1
      %p85 = por %p83, %p84
      %p87 = scmp.ne.s32.totalorder %s72, %s86
      %p88 = scmp.eq.s32.totalorder %s20, 0
      %p89 = por %p87, %p88
      %s91 = sadd.s32 %s90, 1
      %p94 = scmp.eq.s32.totalorder %s14, 1
      %p95 = scmp.ne.s32.totalorder %s90, %s92
      %p96 = scmp.eq.s32.totalorder %s14, 0
      %p97 = por %p95, %p96
      %p98 = scmp.ne.s32.totalorder %s90, %s92
      %p99 = scmp.eq.s32.totalorder %s19, 1
      %p100 = por %p98, %p99
      %p101 = scmp.ne.s32.totalorder %s92, %s93
      %p102 = scmp.eq.s32.totalorder %s19, 0
      %p103 = por %p101, %p102
      %p104 = scmp.ne.s32.totalorder %s92, %s93
      %p105 = scmp.eq.s32.totalorder %s20, 1
      %p106 = por %p104, %p105
      %p108 = scmp.ne.s32.totalorder %s93, %s107
      %p109 = scmp.eq.s32.totalorder %s20, 0
      %p110 = por %p108, %p109
      %s112 = sadd.s32 %s111, 1
      %p115 = scmp.eq.s32.totalorder %s14, 1
      %p116 = scmp.ne.s32.totalorder %s111, %s113
      %p117 = scmp.eq.s32.totalorder %s14, 0
      %p118 = por %p116, %p117
      %p119 = scmp.ne.s32.totalorder %s111, %s113
      %p120 = scmp.eq.s32.totalorder %s19, 1
      %p121 = por %p119, %p120
      %p122 = scmp.ne.s32.totalorder %s113, %s114
      %p123 = scmp.eq.s32.totalorder %s19, 0
      %p124 = por %p122, %p123
      %p125 = scmp.ne.s32.totalorder %s113, %s114
      %p126 = scmp.eq.s32.totalorder %s20, 1
      %p127 = por %p125, %p126
      %p129 = scmp.ne.s32.totalorder %s114, %s128
      %p130 = scmp.eq.s32.totalorder %s20, 0
      %p131 = por %p129, %p130
      %s132 = ssub.s32 %s14, %s21
      %p133 = scmp.eq.s32.totalorder %s132, 0
      %s135 = sadd.s32 %s134, 1
      %s136 = scalar_select %p133, %s134, %s135
      %p139 = pneg %p133
      %p140 = scmp.eq.s32.totalorder %s14, 1
      %p141 = por %p139, %p140
      %p142 = scmp.ne.s32.totalorder %s134, %s137
      %p143 = scmp.eq.s32.totalorder %s14, 0
      %p144 = por %p142, %p143
      %p145 = scmp.ne.s32.totalorder %s134, %s137
      %p146 = scmp.eq.s32.totalorder %s19, 1
      %p147 = por %p145, %p146
      %p148 = scmp.ne.s32.totalorder %s137, %s138
      %p149 = scmp.eq.s32.totalorder %s19, 0
      %p150 = por %p148, %p149
      %p151 = scmp.ne.s32.totalorder %s137, %s138
      %p152 = scmp.eq.s32.totalorder %s20, 1
      %p153 = por %p151, %p152
      %p155 = scmp.ne.s32.totalorder %s138, %s154
      %p156 = scmp.eq.s32.totalorder %s20, 0
      %p157 = por %p155, %p156
      %p158 = scmp.le.s32.totalorder 1, %s14
      %p159 = scmp.lt.s32.totalorder %s14, 3
      %p160 = pnand %p158, %p159
      %p161 = pneg %p160
      // Predicated region
      $region9: #{transition_forward.1} parent=5 // pred_check
        _
      $region10: #{transition_forward.1} parent=5 // pred_check_branch
        %163 = sbr.rel (%p160) target = $region12
      $region11: #{transition_forward.1} parent=5 // pred_region
        %s164 = ssub.s32 %s14, 1
        // Predicated region
        $region13: #{transition_forward.1} parent=11 // pred_check
          %p165 = pneg %p61
        $region14: #{transition_forward.1} parent=11 // pred_check_branch
          %167 = sbr.rel (%p165) target = $region16
        $region15: #{transition_forward.1} parent=11 // pred_region
          _
        $region16: #{transition_forward.1} parent=11 // pred_fallthru
          _
        // Predicated region
        $region17: #{transition_forward.1} parent=11 // pred_check
          %p168 = pneg %p82
        $region18: #{transition_forward.1} parent=11 // pred_check_branch
          %170 = sbr.rel (%p168) target = $region20
        $region19: #{transition_forward.1} parent=11 // pred_region
          _
        $region20: #{transition_forward.1} parent=11 // pred_fallthru
          _
        // Predicated region
        $region21: #{transition_forward.1} parent=11 // pred_check
          %p171 = pneg %p103
        $region22: #{transition_forward.1} parent=11 // pred_check_branch
          %173 = sbr.rel (%p171) target = $region24
        $region23: #{transition_forward.1} parent=11 // pred_region
          _
        $region24: #{transition_forward.1} parent=11 // pred_fallthru
          _
        // Predicated region
        $region25: #{transition_forward.1} parent=11 // pred_check
          %p174 = pneg %p124
        $region26: #{transition_forward.1} parent=11 // pred_check_branch
          %176 = sbr.rel (%p174) target = $region28
        $region27: #{transition_forward.1} parent=11 // pred_region
          _
        $region28: #{transition_forward.1} parent=11 // pred_fallthru
          _
      $region12: #{transition_forward.1} parent=5 // pred_fallthru
        _
      %p177 = scmp.lt.s32.totalorder %s14, 2
      // Predicated region
      $region29: #{transition_forward.1} parent=5 // pred_check
        %p178 = pneg %p177
      $region30: #{transition_forward.1} parent=5 // pred_check_branch
        %180 = sbr.rel (%p178) target = $region32
      $region31: #{transition_forward.1} parent=5 // pred_region
        // Predicated region
        $region33: #{transition_forward.1} parent=31 // pred_check
          %p181 = pneg %p34
        $region34: #{transition_forward.1} parent=31 // pred_check_branch
          %183 = sbr.rel (%p181) target = $region36
        $region35: #{transition_forward.1} parent=31 // pred_region
          %s184 = smul.u32 32, %s14
          %p185 = scmp.lt.s32.totalorder %s184, 63
          %s186 = scalar_select %p185, %s184, 63
          %s187 = smul.addr %s186, 2
          %s188 = smul.addr %s187, 4
          %s189 = scalar_lea.vmem %s0, %s188
          %s190 = smul.u32 32, %s14
        $region36: #{transition_forward.1} parent=31 // pred_fallthru
          _
      $region32: #{transition_forward.1} parent=5 // pred_fallthru
        _
      %p191 = scmp.le.s32.totalorder 1, %s14
      %p192 = scmp.lt.s32.totalorder %s14, 3
      %p193 = pnand %p191, %p192
      %p194 = pneg %p193
      // Predicated region
      $region37: #{transition_forward.1} parent=5 // pred_check
        _
      $region38: #{transition_forward.1} parent=5 // pred_check_branch
        %196 = sbr.rel (%p193) target = $region40
      $region39: #{transition_forward.1} parent=5 // pred_region
        %s197 = ssub.s32 %s14, 1
        %s198 = smul.u32 32, %s19
        %p199 = scmp.lt.s32.totalorder %s198, 63
        %s200 = scalar_select %p199, %s198, 63
        %s201 = smul.addr %s200, 2
        %s202 = smul.addr %s201, 4
        %s203 = scalar_lea.vmem %s0, %s202
        %p204 = pneg %p40
        %p205 = pneg %p37
        %p206 = pneg %p61
        %p207 = pneg %p58
        %p208 = pneg %p82
        %p209 = pneg %p79
        %p210 = pneg %p103
        %p211 = pneg %p100
        %p212 = pneg %p124
        %p213 = pneg %p121
        %p214 = pneg %p150
        %p215 = pneg %p147
        %s216 = sand.u32 %s137, 1
        %s217 = scalar_lea.sflag [#allocation3], %s216
        %s218 = sand.u32 %s137, 1
        %s219 = smul.addr %s218, 64
        %s220 = scalar_lea.vmem [#allocation2], %s219
        %s221 = smul.u32 32, %s19
        %p222 = scmp.lt.s32.totalorder %s221, 63
        %s223 = scalar_select %p222, %s221, 63
        %s224 = smul.addr %s223, 2
        %s225 = smul.addr %s224, 4
        %s226 = scalar_lea.vmem %s0, %s225
        %s227 = smul.u32 32, %s19
        %s228 = smul.u32 8, %s19
        %v230 = vld [vmem:[%s226] sm:$0xff]
        %v231 = vld [vmem:[%s226 + $0x8] sm:$0xff]
        %v232 = vld [vmem:[%s226 + $0x10] sm:$0xff]
        %v233 = vld [vmem:[%s226 + $0x18] sm:$0xff]
        %v234 = vld [vmem:[%s226 + $0x20] sm:$0xff]
        %v235 = vld [vmem:[%s226 + $0x28] sm:$0xff]
        %v236 = vld [vmem:[%s226 + $0x30] sm:$0xff]
        %v237 = vld [vmem:[%s226 + $0x38] sm:$0xff]
        %v238 = vld [vmem:[%s226 + $0x40] sm:$0xff]
        %v239 = vld [vmem:[%s226 + $0x48] sm:$0xff]
        %v240 = vld [vmem:[%s226 + $0x50] sm:$0xff]
        %v241 = vld [vmem:[%s226 + $0x58] sm:$0xff]
        %v242 = vld [vmem:[%s226 + $0x60] sm:$0xff]
        %v243 = vld [vmem:[%s226 + $0x68] sm:$0xff]
        %v244 = vld [vmem:[%s226 + $0x70] sm:$0xff]
        %v245 = vld [vmem:[%s226 + $0x78] sm:$0xff]
        %v246 = vld [vmem:[%s226 + $0x80] sm:$0xff]
        %v247 = vld [vmem:[%s226 + $0x88] sm:$0xff]
        %v248 = vld [vmem:[%s226 + $0x90] sm:$0xff]
        %v249 = vld [vmem:[%s226 + $0x98] sm:$0xff]
        %v250 = vld [vmem:[%s226 + $0xa0] sm:$0xff]
        %v251 = vld [vmem:[%s226 + $0xa8] sm:$0xff]
        %v252 = vld [vmem:[%s226 + $0xb0] sm:$0xff]
        %v253 = vld [vmem:[%s226 + $0xb8] sm:$0xff]
        %v254 = vld [vmem:[%s226 + $0xc0] sm:$0xff]
        %v255 = vld [vmem:[%s226 + $0xc8] sm:$0xff]
        %v256 = vld [vmem:[%s226 + $0xd0] sm:$0xff]
        %v257 = vld [vmem:[%s226 + $0xd8] sm:$0xff]
        %v258 = vld [vmem:[%s226 + $0xe0] sm:$0xff]
        %v259 = vld [vmem:[%s226 + $0xe8] sm:$0xff]
        %v260 = vld [vmem:[%s226 + $0xf0] sm:$0xff]
        %v261 = vld [vmem:[%s226 + $0xf8] sm:$0xff]
        %v262 = vunpack.c.l.bf16 %v230
        %v263 = vunpack.c.h.bf16 %v230
        %v264 = vunpack.c.l.bf16 %v231
        %v265 = vunpack.c.h.bf16 %v231
        %v266 = vunpack.c.l.bf16 %v232
        %v267 = vunpack.c.h.bf16 %v232
        %v268 = vunpack.c.l.bf16 %v233
        %v269 = vunpack.c.h.bf16 %v233
        %v270 = vunpack.c.l.bf16 %v234
        %v271 = vunpack.c.h.bf16 %v234
        %v272 = vunpack.c.l.bf16 %v235
        %v273 = vunpack.c.h.bf16 %v235
        %v274 = vunpack.c.l.bf16 %v236
        %v275 = vunpack.c.h.bf16 %v236
        %v276 = vunpack.c.l.bf16 %v237
        %v277 = vunpack.c.h.bf16 %v237
        %v278 = vunpack.c.l.bf16 %v238
        %v279 = vunpack.c.h.bf16 %v238
        %v280 = vunpack.c.l.bf16 %v239
        %v281 = vunpack.c.h.bf16 %v239
        %v282 = vunpack.c.l.bf16 %v240
        %v283 = vunpack.c.h.bf16 %v240
        %v284 = vunpack.c.l.bf16 %v241
        %v285 = vunpack.c.h.bf16 %v241
        %v286 = vunpack.c.l.bf16 %v242
        %v287 = vunpack.c.h.bf16 %v242
        %v288 = vunpack.c.l.bf16 %v243
        %v289 = vunpack.c.h.bf16 %v243
        %v290 = vunpack.c.l.bf16 %v244
        %v291 = vunpack.c.h.bf16 %v244
        %v292 = vunpack.c.l.bf16 %v245
        %v293 = vunpack.c.h.bf16 %v245
        %v294 = vunpack.c.l.bf16 %v246
        %v295 = vunpack.c.h.bf16 %v246
        %v296 = vunpack.c.l.bf16 %v247
        %v297 = vunpack.c.h.bf16 %v247
        %v298 = vunpack.c.l.bf16 %v248
        %v299 = vunpack.c.h.bf16 %v248
        %v300 = vunpack.c.l.bf16 %v249
        %v301 = vunpack.c.h.bf16 %v249
        %v302 = vunpack.c.l.bf16 %v250
        %v303 = vunpack.c.h.bf16 %v250
        %v304 = vunpack.c.l.bf16 %v251
        %v305 = vunpack.c.h.bf16 %v251
        %v306 = vunpack.c.l.bf16 %v252
        %v307 = vunpack.c.h.bf16 %v252
        %v308 = vunpack.c.l.bf16 %v253
        %v309 = vunpack.c.h.bf16 %v253
        %v310 = vunpack.c.l.bf16 %v254
        %v311 = vunpack.c.h.bf16 %v254
        %v312 = vunpack.c.l.bf16 %v255
        %v313 = vunpack.c.h.bf16 %v255
        %v314 = vunpack.c.l.bf16 %v256
        %v315 = vunpack.c.h.bf16 %v256
        %v316 = vunpack.c.l.bf16 %v257
        %v317 = vunpack.c.h.bf16 %v257
        %v318 = vunpack.c.l.bf16 %v258
        %v319 = vunpack.c.h.bf16 %v258
        %v320 = vunpack.c.l.bf16 %v259
        %v321 = vunpack.c.h.bf16 %v259
        %v322 = vunpack.c.l.bf16 %v260
        %v323 = vunpack.c.h.bf16 %v260
        %v324 = vunpack.c.l.bf16 %v261
        %v325 = vunpack.c.h.bf16 %v261
        %v326 = vld [vmem:[%s3] sm:$0x3]
        %v328 = vlaneseq
        %v329 = vshrl.u32 %v328, 7
        %v330 = vsub.s32 0, %v329
        %v331 = vrot.slane %v326, %v330
        %v332 = vlaneseq
        %v333 = vshrl.u32 %v332, 7
        %v334 = vsub.s32 1, %v333
        %v335 = vrot.slane %v326, %v334
        %v338 = vmul.f32 %v262, %v331
        %v339 = vmul.f32 %v263, %v335
        %v340 = vmul.f32 %v264, %v331
        %v341 = vmul.f32 %v265, %v335
        %v342 = vmul.f32 %v266, %v331
        %v343 = vmul.f32 %v267, %v335
        %v344 = vmul.f32 %v268, %v331
        %v345 = vmul.f32 %v269, %v335
        %v346 = vmul.f32 %v270, %v331
        %v347 = vmul.f32 %v271, %v335
        %v348 = vmul.f32 %v272, %v331
        %v349 = vmul.f32 %v273, %v335
        %v350 = vmul.f32 %v274, %v331
        %v351 = vmul.f32 %v275, %v335
        %v352 = vmul.f32 %v276, %v331
        %v353 = vmul.f32 %v277, %v335
        %v354 = vmul.f32 %v278, %v331
        %v355 = vmul.f32 %v279, %v335
        %v356 = vmul.f32 %v280, %v331
        %v357 = vmul.f32 %v281, %v335
        %v358 = vmul.f32 %v282, %v331
        %v359 = vmul.f32 %v283, %v335
        %v360 = vmul.f32 %v284, %v331
        %v361 = vmul.f32 %v285, %v335
        %v362 = vmul.f32 %v286, %v331
        %v363 = vmul.f32 %v287, %v335
        %v364 = vmul.f32 %v288, %v331
        %v365 = vmul.f32 %v289, %v335
        %v366 = vmul.f32 %v290, %v331
        %v367 = vmul.f32 %v291, %v335
        %v368 = vmul.f32 %v292, %v331
        %v369 = vmul.f32 %v293, %v335
        %v370 = vmul.f32 %v294, %v331
        %v371 = vmul.f32 %v295, %v335
        %v372 = vmul.f32 %v296, %v331
        %v373 = vmul.f32 %v297, %v335
        %v374 = vmul.f32 %v298, %v331
        %v375 = vmul.f32 %v299, %v335
        %v376 = vmul.f32 %v300, %v331
        %v377 = vmul.f32 %v301, %v335
        %v378 = vmul.f32 %v302, %v331
        %v379 = vmul.f32 %v303, %v335
        %v380 = vmul.f32 %v304, %v331
        %v381 = vmul.f32 %v305, %v335
        %v382 = vmul.f32 %v306, %v331
        %v383 = vmul.f32 %v307, %v335
        %v384 = vmul.f32 %v308, %v331
        %v385 = vmul.f32 %v309, %v335
        %v386 = vmul.f32 %v310, %v331
        %v387 = vmul.f32 %v311, %v335
        %v388 = vmul.f32 %v312, %v331
        %v389 = vmul.f32 %v313, %v335
        %v390 = vmul.f32 %v314, %v331
        %v391 = vmul.f32 %v315, %v335
        %v392 = vmul.f32 %v316, %v331
        %v393 = vmul.f32 %v317, %v335
        %v394 = vmul.f32 %v318, %v331
        %v395 = vmul.f32 %v319, %v335
        %v396 = vmul.f32 %v320, %v331
        %v397 = vmul.f32 %v321, %v335
        %v398 = vmul.f32 %v322, %v331
        %v399 = vmul.f32 %v323, %v335
        %v400 = vmul.f32 %v324, %v331
        %v401 = vmul.f32 %v325, %v335
        %v402 = vld [vmem:[%s4] sm:$0x3]
        %v404 = vlaneseq
        %v405 = vshrl.u32 %v404, 7
        %v406 = vsub.s32 0, %v405
        %v407 = vrot.slane %v402, %v406
        %v408 = vlaneseq
        %v409 = vshrl.u32 %v408, 7
        %v410 = vsub.s32 1, %v409
        %v411 = vrot.slane %v402, %v410
        %v414 = vadd.f32 %v338, %v407
        %v415 = vadd.f32 %v339, %v411
        %v416 = vadd.f32 %v340, %v407
        %v417 = vadd.f32 %v341, %v411
        %v418 = vadd.f32 %v342, %v407
        %v419 = vadd.f32 %v343, %v411
        %v420 = vadd.f32 %v344, %v407
        %v421 = vadd.f32 %v345, %v411
        %v422 = vadd.f32 %v346, %v407
        %v423 = vadd.f32 %v347, %v411
        %v424 = vadd.f32 %v348, %v407
        %v425 = vadd.f32 %v349, %v411
        %v426 = vadd.f32 %v350, %v407
        %v427 = vadd.f32 %v351, %v411
        %v428 = vadd.f32 %v352, %v407
        %v429 = vadd.f32 %v353, %v411
        %v430 = vadd.f32 %v354, %v407
        %v431 = vadd.f32 %v355, %v411
        %v432 = vadd.f32 %v356, %v407
        %v433 = vadd.f32 %v357, %v411
        %v434 = vadd.f32 %v358, %v407
        %v435 = vadd.f32 %v359, %v411
        %v436 = vadd.f32 %v360, %v407
        %v437 = vadd.f32 %v361, %v411
        %v438 = vadd.f32 %v362, %v407
        %v439 = vadd.f32 %v363, %v411
        %v440 = vadd.f32 %v364, %v407
        %v441 = vadd.f32 %v365, %v411
        %v442 = vadd.f32 %v366, %v407
        %v443 = vadd.f32 %v367, %v411
        %v444 = vadd.f32 %v368, %v407
        %v445 = vadd.f32 %v369, %v411
        %v446 = vadd.f32 %v370, %v407
        %v447 = vadd.f32 %v371, %v411
        %v448 = vadd.f32 %v372, %v407
        %v449 = vadd.f32 %v373, %v411
        %v450 = vadd.f32 %v374, %v407
        %v451 = vadd.f32 %v375, %v411
        %v452 = vadd.f32 %v376, %v407
        %v453 = vadd.f32 %v377, %v411
        %v454 = vadd.f32 %v378, %v407
        %v455 = vadd.f32 %v379, %v411
        %v456 = vadd.f32 %v380, %v407
        %v457 = vadd.f32 %v381, %v411
        %v458 = vadd.f32 %v382, %v407
        %v459 = vadd.f32 %v383, %v411
        %v460 = vadd.f32 %v384, %v407
        %v461 = vadd.f32 %v385, %v411
        %v462 = vadd.f32 %v386, %v407
        %v463 = vadd.f32 %v387, %v411
        %v464 = vadd.f32 %v388, %v407
        %v465 = vadd.f32 %v389, %v411
        %v466 = vadd.f32 %v390, %v407
        %v467 = vadd.f32 %v391, %v411
        %v468 = vadd.f32 %v392, %v407
        %v469 = vadd.f32 %v393, %v411
        %v470 = vadd.f32 %v394, %v407
        %v471 = vadd.f32 %v395, %v411
        %v472 = vadd.f32 %v396, %v407
        %v473 = vadd.f32 %v397, %v411
        %v474 = vadd.f32 %v398, %v407
        %v475 = vadd.f32 %v399, %v411
        %v476 = vadd.f32 %v400, %v407
        %v477 = vadd.f32 %v401, %v411
        %v478 = vmax.f32 %v414, 0.0
        %v479 = vmax.f32 %v415, 0.0
        %v480 = vmax.f32 %v416, 0.0
        %v481 = vmax.f32 %v417, 0.0
        %v482 = vmax.f32 %v418, 0.0
        %v483 = vmax.f32 %v419, 0.0
        %v484 = vmax.f32 %v420, 0.0
        %v485 = vmax.f32 %v421, 0.0
        %v486 = vmax.f32 %v422, 0.0
        %v487 = vmax.f32 %v423, 0.0
        %v488 = vmax.f32 %v424, 0.0
        %v489 = vmax.f32 %v425, 0.0
        %v490 = vmax.f32 %v426, 0.0
        %v491 = vmax.f32 %v427, 0.0
        %v492 = vmax.f32 %v428, 0.0
        %v493 = vmax.f32 %v429, 0.0
        %v494 = vmax.f32 %v430, 0.0
        %v495 = vmax.f32 %v431, 0.0
        %v496 = vmax.f32 %v432, 0.0
        %v497 = vmax.f32 %v433, 0.0
        %v498 = vmax.f32 %v434, 0.0
        %v499 = vmax.f32 %v435, 0.0
        %v500 = vmax.f32 %v436, 0.0
        %v501 = vmax.f32 %v437, 0.0
        %v502 = vmax.f32 %v438, 0.0
        %v503 = vmax.f32 %v439, 0.0
        %v504 = vmax.f32 %v440, 0.0
        %v505 = vmax.f32 %v441, 0.0
        %v506 = vmax.f32 %v442, 0.0
        %v507 = vmax.f32 %v443, 0.0
        %v508 = vmax.f32 %v444, 0.0
        %v509 = vmax.f32 %v445, 0.0
        %v510 = vmax.f32 %v446, 0.0
        %v511 = vmax.f32 %v447, 0.0
        %v512 = vmax.f32 %v448, 0.0
        %v513 = vmax.f32 %v449, 0.0
        %v514 = vmax.f32 %v450, 0.0
        %v515 = vmax.f32 %v451, 0.0
        %v516 = vmax.f32 %v452, 0.0
        %v517 = vmax.f32 %v453, 0.0
        %v518 = vmax.f32 %v454, 0.0
        %v519 = vmax.f32 %v455, 0.0
        %v520 = vmax.f32 %v456, 0.0
        %v521 = vmax.f32 %v457, 0.0
        %v522 = vmax.f32 %v458, 0.0
        %v523 = vmax.f32 %v459, 0.0
        %v524 = vmax.f32 %v460, 0.0
        %v525 = vmax.f32 %v461, 0.0
        %v526 = vmax.f32 %v462, 0.0
        %v527 = vmax.f32 %v463, 0.0
        %v528 = vmax.f32 %v464, 0.0
        %v529 = vmax.f32 %v465, 0.0
        %v530 = vmax.f32 %v466, 0.0
        %v531 = vmax.f32 %v467, 0.0
        %v532 = vmax.f32 %v468, 0.0
        %v533 = vmax.f32 %v469, 0.0
        %v534 = vmax.f32 %v470, 0.0
        %v535 = vmax.f32 %v471, 0.0
        %v536 = vmax.f32 %v472, 0.0
        %v537 = vmax.f32 %v473, 0.0
        %v538 = vmax.f32 %v474, 0.0
        %v539 = vmax.f32 %v475, 0.0
        %v540 = vmax.f32 %v476, 0.0
        %v541 = vmax.f32 %v477, 0.0
        %v542 = vld [vmem:[%s1] sm:$0xff]
        %v543 = vld [vmem:[%s1 + $0x8] sm:$0xff]
        %v544 = vld [vmem:[%s1 + $0x10] sm:$0xff]
        %v545 = vld [vmem:[%s1 + $0x18] sm:$0xff]
        %v546 = vld [vmem:[%s1 + $0x20] sm:$0xff]
        %v547 = vld [vmem:[%s1 + $0x28] sm:$0xff]
        %v548 = vld [vmem:[%s1 + $0x30] sm:$0xff]
        %v549 = vld [vmem:[%s1 + $0x38] sm:$0xff]
        %v550 = vpack.c.bf16 %v480, %v478
        %v551 = vpack.c.bf16 %v481, %v479
        %v552 = vpack.c.bf16 %v484, %v482
        %v553 = vpack.c.bf16 %v485, %v483
        %v554 = vpack.c.bf16 %v488, %v486
        %v555 = vpack.c.bf16 %v489, %v487
        %v556 = vpack.c.bf16 %v492, %v490
        %v557 = vpack.c.bf16 %v493, %v491
        %v558 = vpack.c.bf16 %v496, %v494
        %v559 = vpack.c.bf16 %v497, %v495
        %v560 = vpack.c.bf16 %v500, %v498
        %v561 = vpack.c.bf16 %v501, %v499
        %v562 = vpack.c.bf16 %v504, %v502
        %v563 = vpack.c.bf16 %v505, %v503
        %v564 = vpack.c.bf16 %v508, %v506
        %v565 = vpack.c.bf16 %v509, %v507
        %v566 = vpack.c.bf16 %v512, %v510
        %v567 = vpack.c.bf16 %v513, %v511
        %v568 = vpack.c.bf16 %v516, %v514
        %v569 = vpack.c.bf16 %v517, %v515
        %v570 = vpack.c.bf16 %v520, %v518
        %v571 = vpack.c.bf16 %v521, %v519
        %v572 = vpack.c.bf16 %v524, %v522
        %v573 = vpack.c.bf16 %v525, %v523
        %v574 = vpack.c.bf16 %v528, %v526
        %v575 = vpack.c.bf16 %v529, %v527
        %v576 = vpack.c.bf16 %v532, %v530
        %v577 = vpack.c.bf16 %v533, %v531
        %v578 = vpack.c.bf16 %v536, %v534
        %v579 = vpack.c.bf16 %v537, %v535
        %v580 = vpack.c.bf16 %v540, %v538
        %v581 = vpack.c.bf16 %v541, %v539
        %v590 = vunpack.c.l.b16 %v542
        %v591 = vunpack.c.h.b16 %v542
        %v592 = vunpack.c.l.b16 %v543
        %v593 = vunpack.c.h.b16 %v543
        %v594 = vunpack.c.l.b16 %v544
        %v595 = vunpack.c.h.b16 %v544
        %v596 = vunpack.c.l.b16 %v545
        %v597 = vunpack.c.h.b16 %v545
        %v598 = vunpack.c.l.b16 %v546
        %v599 = vunpack.c.h.b16 %v546
        %v600 = vunpack.c.l.b16 %v547
        %v601 = vunpack.c.h.b16 %v547
        %v602 = vunpack.c.l.b16 %v548
        %v603 = vunpack.c.h.b16 %v548
        %v604 = vunpack.c.l.b16 %v549
        %v605 = vunpack.c.h.b16 %v549
        %v606 = vpack.c.b16 %v592, %v590
        %v607 = vpack.c.b16 %v593, %v591
        %v608 = vpack.c.b16 %v596, %v594
        %v609 = vpack.c.b16 %v597, %v595
        %v610 = vpack.c.b16 %v600, %v598
        %v611 = vpack.c.b16 %v601, %v599
        %v612 = vpack.c.b16 %v604, %v602
        %v613 = vpack.c.b16 %v605, %v603
        %622 = vmatprep.subr.bf16.mxu0 %v565
        %623 = vmatpush1.bf16.msra.mxu0 %v564
        %624 = vmatprep.subr.bf16.mxu0 %v563
        %625 = vmatpush1.bf16.msra.mxu0 %v562
        %626 = vmatprep.subr.bf16.mxu0 %v561
        %627 = vmatpush1.bf16.msra.mxu0 %v560
        %628 = vmatprep.subr.bf16.mxu0 %v559
        %629 = vmatpush1.bf16.msra.mxu0 %v558
        %630 = vmatprep.subr.bf16.mxu0 %v557
        %631 = vmatpush1.bf16.msra.mxu0 %v556
        %632 = vmatprep.subr.bf16.mxu0 %v555
        %633 = vmatpush1.bf16.msra.mxu0 %v554
        %634 = vmatprep.subr.bf16.mxu0 %v553
        %635 = vmatpush1.bf16.msra.mxu0 %v552
        %636 = vmatprep.subr.bf16.mxu0 %v551
        %637 = vmatpush1.bf16.msra.mxu0 %v550
        %638 = vmatprep.subr.bf16.mxu0 %v581
        %639 = vmatpush2.bf16.msra.mxu0 %v580
        %640 = vmatprep.subr.bf16.mxu0 %v579
        %641 = vmatpush2.bf16.msra.mxu0 %v578
        %642 = vmatprep.subr.bf16.mxu0 %v577
        %643 = vmatpush2.bf16.msra.mxu0 %v576
        %644 = vmatprep.subr.bf16.mxu0 %v575
        %645 = vmatpush2.bf16.msra.mxu0 %v574
        %646 = vmatprep.subr.bf16.mxu0 %v573
        %647 = vmatpush2.bf16.msra.mxu0 %v572
        %648 = vmatprep.subr.bf16.mxu0 %v571
        %649 = vmatpush2.bf16.msra.mxu0 %v570
        %650 = vmatprep.subr.bf16.mxu0 %v569
        %651 = vmatpush2.bf16.msra.mxu0 %v568
        %652 = vmatprep.subr.bf16.mxu0 %v567
        %653 = vmatpush2.bf16.msra.mxu0 %v566
        %654 = vmatprep.mubr.bf16.mxu0 %v607
        %655 = vmatmul.mubr.bf16.gmra.mxu0 %v606
        %v656 = vpop.f32.mrf.mxu0
        %v657 = vadd.f32 0.0, %v656
        %v658 = vpop.f32.mrf.mxu0
        %v659 = vadd.f32 0.0, %v658
        %v660 = vpop.f32.mrf.mxu0
        %v661 = vadd.f32 0.0, %v660
        %v662 = vpop.f32.mrf.mxu0
        %v663 = vadd.f32 0.0, %v662
        %664 = vmatprep.mubr.bf16.mxu0 %v609
        %665 = vmatmul.mubr.bf16.gmra.mxu0 %v608
        %v666 = vpop.f32.mrf.mxu0
        %v667 = vadd.f32 0.0, %v666
        %v668 = vpop.f32.mrf.mxu0
        %v669 = vadd.f32 0.0, %v668
        %v670 = vpop.f32.mrf.mxu0
        %v671 = vadd.f32 0.0, %v670
        %v672 = vpop.f32.mrf.mxu0
        %v673 = vadd.f32 0.0, %v672
        %674 = vmatprep.mubr.bf16.mxu0 %v611
        %675 = vmatmul.mubr.bf16.gmra.mxu0 %v610
        %v676 = vpop.f32.mrf.mxu0
        %v677 = vadd.f32 0.0, %v676
        %v678 = vpop.f32.mrf.mxu0
        %v679 = vadd.f32 0.0, %v678
        %v680 = vpop.f32.mrf.mxu0
        %v681 = vadd.f32 0.0, %v680
        %v682 = vpop.f32.mrf.mxu0
        %v683 = vadd.f32 0.0, %v682
        %684 = vmatprep.mubr.bf16.mxu0 %v613
        %685 = vmatmul.mubr.bf16.gmra.mxu0 %v612
        %v686 = vpop.f32.mrf.mxu0
        %v687 = vadd.f32 0.0, %v686
        %v688 = vpop.f32.mrf.mxu0
        %v689 = vadd.f32 0.0, %v688
        %v690 = vpop.f32.mrf.mxu0
        %v691 = vadd.f32 0.0, %v690
        %v692 = vpop.f32.mrf.mxu0
        %v693 = vadd.f32 0.0, %v692
        %694 = vdwg.mxu0
        %v695 = vpack.c.bf16 %v661, %v657
        %v696 = vpack.c.bf16 %v663, %v659
        %v697 = vpack.c.bf16 %v671, %v667
        %v698 = vpack.c.bf16 %v673, %v669
        %v699 = vpack.c.bf16 %v681, %v677
        %v700 = vpack.c.bf16 %v683, %v679
        %v701 = vpack.c.bf16 %v691, %v687
        %v702 = vpack.c.bf16 %v693, %v689
        %v703 = vld [vmem:[%s2] sm:$0xf]
        %v704 = vld [vmem:[%s2 + $0x4] sm:$0xf]
        %v705 = vld [vmem:[%s2 + $0x8] sm:$0xf]
        %v706 = vld [vmem:[%s2 + $0xc] sm:$0xf]
        %v707 = vld [vmem:[%s2 + $0x10] sm:$0xf]
        %v708 = vld [vmem:[%s2 + $0x14] sm:$0xf]
        %v709 = vld [vmem:[%s2 + $0x18] sm:$0xf]
        %v710 = vld [vmem:[%s2 + $0x1c] sm:$0xf]
        %v711 = vld [vmem:[%s2 + $0x20] sm:$0xf]
        %v712 = vld [vmem:[%s2 + $0x24] sm:$0xf]
        %v713 = vld [vmem:[%s2 + $0x28] sm:$0xf]
        %v714 = vld [vmem:[%s2 + $0x2c] sm:$0xf]
        %v715 = vld [vmem:[%s2 + $0x30] sm:$0xf]
        %v716 = vld [vmem:[%s2 + $0x34] sm:$0xf]
        %v717 = vld [vmem:[%s2 + $0x38] sm:$0xf]
        %v718 = vld [vmem:[%s2 + $0x3c] sm:$0xf]
        %v719 = vld [vmem:[%s2 + $0x40] sm:$0xf]
        %v720 = vld [vmem:[%s2 + $0x44] sm:$0xf]
        %v721 = vld [vmem:[%s2 + $0x48] sm:$0xf]
        %v722 = vld [vmem:[%s2 + $0x4c] sm:$0xf]
        %v723 = vld [vmem:[%s2 + $0x50] sm:$0xf]
        %v724 = vld [vmem:[%s2 + $0x54] sm:$0xf]
        %v725 = vld [vmem:[%s2 + $0x58] sm:$0xf]
        %v726 = vld [vmem:[%s2 + $0x5c] sm:$0xf]
        %v727 = vld [vmem:[%s2 + $0x60] sm:$0xf]
        %v728 = vld [vmem:[%s2 + $0x64] sm:$0xf]
        %v729 = vld [vmem:[%s2 + $0x68] sm:$0xf]
        %v730 = vld [vmem:[%s2 + $0x6c] sm:$0xf]
        %v731 = vld [vmem:[%s2 + $0x70] sm:$0xf]
        %v732 = vld [vmem:[%s2 + $0x74] sm:$0xf]
        %v733 = vld [vmem:[%s2 + $0x78] sm:$0xf]
        %v734 = vld [vmem:[%s2 + $0x7c] sm:$0xf]
        %v767 = vunpack.c.l.b16 %v703
        %v768 = vunpack.c.l.b16 %v704
        %v769 = vunpack.c.l.b16 %v705
        %v770 = vunpack.c.l.b16 %v706
        %v771 = vunpack.c.l.b16 %v707
        %v772 = vunpack.c.l.b16 %v708
        %v773 = vunpack.c.l.b16 %v709
        %v774 = vunpack.c.l.b16 %v710
        %v775 = vunpack.c.l.b16 %v711
        %v776 = vunpack.c.l.b16 %v712
        %v777 = vunpack.c.l.b16 %v713
        %v778 = vunpack.c.l.b16 %v714
        %v779 = vunpack.c.l.b16 %v715
        %v780 = vunpack.c.l.b16 %v716
        %v781 = vunpack.c.l.b16 %v717
        %v782 = vunpack.c.l.b16 %v718
        %v783 = vunpack.c.l.b16 %v719
        %v784 = vunpack.c.l.b16 %v720
        %v785 = vunpack.c.l.b16 %v721
        %v786 = vunpack.c.l.b16 %v722
        %v787 = vunpack.c.l.b16 %v723
        %v788 = vunpack.c.l.b16 %v724
        %v789 = vunpack.c.l.b16 %v725
        %v790 = vunpack.c.l.b16 %v726
        %v791 = vunpack.c.l.b16 %v727
        %v792 = vunpack.c.l.b16 %v728
        %v793 = vunpack.c.l.b16 %v729
        %v794 = vunpack.c.l.b16 %v730
        %v795 = vunpack.c.l.b16 %v731
        %v796 = vunpack.c.l.b16 %v732
        %v797 = vunpack.c.l.b16 %v733
        %v798 = vunpack.c.l.b16 %v734
        %v799 = vpack.c.b16 %v768, %v767
        %v800 = vpack.c.b16 %v770, %v769
        %v801 = vpack.c.b16 %v772, %v771
        %v802 = vpack.c.b16 %v774, %v773
        %v803 = vpack.c.b16 %v776, %v775
        %v804 = vpack.c.b16 %v778, %v777
        %v805 = vpack.c.b16 %v780, %v779
        %v806 = vpack.c.b16 %v782, %v781
        %v807 = vpack.c.b16 %v784, %v783
        %v808 = vpack.c.b16 %v786, %v785
        %v809 = vpack.c.b16 %v788, %v787
        %v810 = vpack.c.b16 %v790, %v789
        %v811 = vpack.c.b16 %v792, %v791
        %v812 = vpack.c.b16 %v794, %v793
        %v813 = vpack.c.b16 %v796, %v795
        %v814 = vpack.c.b16 %v798, %v797
        %831 = vmatprep.subr.bf16.mxu0 0
        %832 = vmatpush1.bf16.msra.mxu0 %v806
        %833 = vmatprep.subr.bf16.mxu0 0
        %834 = vmatpush1.bf16.msra.mxu0 %v805
        %835 = vmatprep.subr.bf16.mxu0 0
        %836 = vmatpush1.bf16.msra.mxu0 %v804
        %837 = vmatprep.subr.bf16.mxu0 0
        %838 = vmatpush1.bf16.msra.mxu0 %v803
        %839 = vmatprep.subr.bf16.mxu0 0
        %840 = vmatpush1.bf16.msra.mxu0 %v802
        %841 = vmatprep.subr.bf16.mxu0 0
        %842 = vmatpush1.bf16.msra.mxu0 %v801
        %843 = vmatprep.subr.bf16.mxu0 0
        %844 = vmatpush1.bf16.msra.mxu0 %v800
        %845 = vmatprep.subr.bf16.mxu0 0
        %846 = vmatpush1.bf16.msra.mxu0 %v799
        %847 = vmatprep.subr.bf16.mxu0 0
        %848 = vmatpush2.bf16.msra.mxu0 %v814
        %849 = vmatprep.subr.bf16.mxu0 0
        %850 = vmatpush2.bf16.msra.mxu0 %v813
        %851 = vmatprep.subr.bf16.mxu0 0
        %852 = vmatpush2.bf16.msra.mxu0 %v812
        %853 = vmatprep.subr.bf16.mxu0 0
        %854 = vmatpush2.bf16.msra.mxu0 %v811
        %855 = vmatprep.subr.bf16.mxu0 0
        %856 = vmatpush2.bf16.msra.mxu0 %v810
        %857 = vmatprep.subr.bf16.mxu0 0
        %858 = vmatpush2.bf16.msra.mxu0 %v809
        %859 = vmatprep.subr.bf16.mxu0 0
        %860 = vmatpush2.bf16.msra.mxu0 %v808
        %861 = vmatprep.subr.bf16.mxu0 0
        %862 = vmatpush2.bf16.msra.mxu0 %v807
        %863 = vmatprep.mubr.bf16.mxu0 %v696
        %864 = vmatmul.mubr.bf16.gmra.mxu0 %v695
        %v865 = vpop.f32.mrf.mxu0
        %v866 = vadd.f32 0.0, %v865
        %v867 = vpop.f32.mrf.mxu0
        %v868 = vpop.f32.mrf.mxu0
        %v869 = vadd.f32 0.0, %v868
        %v870 = vpop.f32.mrf.mxu0
        %871 = vmatprep.mubr.bf16.mxu0 %v698
        %872 = vmatmul.mubr.bf16.gmra.mxu0 %v697
        %v873 = vpop.f32.mrf.mxu0
        %v874 = vadd.f32 0.0, %v873
        %v875 = vpop.f32.mrf.mxu0
        %v876 = vpop.f32.mrf.mxu0
        %v877 = vadd.f32 0.0, %v876
        %v878 = vpop.f32.mrf.mxu0
        %879 = vmatprep.mubr.bf16.mxu0 %v700
        %880 = vmatmul.mubr.bf16.gmra.mxu0 %v699
        %v881 = vpop.f32.mrf.mxu0
        %v882 = vadd.f32 0.0, %v881
        %v883 = vpop.f32.mrf.mxu0
        %v884 = vpop.f32.mrf.mxu0
        %v885 = vadd.f32 0.0, %v884
        %v886 = vpop.f32.mrf.mxu0
        %887 = vmatprep.mubr.bf16.mxu0 %v702
        %888 = vmatmul.mubr.bf16.gmra.mxu0 %v701
        %v889 = vpop.f32.mrf.mxu0
        %v890 = vadd.f32 0.0, %v889
        %v891 = vpop.f32.mrf.mxu0
        %v892 = vpop.f32.mrf.mxu0
        %v893 = vadd.f32 0.0, %v892
        %v894 = vpop.f32.mrf.mxu0
        %895 = vdwg.mxu0
        %896 = vst [vmem:[%s220] sm:$0xff] %v866
        %897 = vst [vmem:[%s220 + $0x8] sm:$0xff] %v869
        %898 = vst [vmem:[%s220 + $0x10] sm:$0xff] %v874
        %899 = vst [vmem:[%s220 + $0x18] sm:$0xff] %v877
        %900 = vst [vmem:[%s220 + $0x20] sm:$0xff] %v882
        %901 = vst [vmem:[%s220 + $0x28] sm:$0xff] %v885
        %902 = vst [vmem:[%s220 + $0x30] sm:$0xff] %v890
        %903 = vst [vmem:[%s220 + $0x38] sm:$0xff] %v893
        %s904 = sand.u32 %s137, 1
        %s905 = scalar_lea.sflag [#allocation3], %s904
        %s906 = sand.u32 %s137, 1
        %s907 = smul.addr %s906, 64
        %s908 = scalar_lea.vmem [#allocation2], %s907
        // Predicated region
        $region41: #{transition_forward.1} parent=39 // pred_check
          %p909 = pneg %p147
        $region42: #{transition_forward.1} parent=39 // pred_check_branch
          %911 = sbr.rel (%p909) target = $region44
        $region43: #{transition_forward.1} parent=39 // pred_region
          %s912 = smul.u32 8, %s19
          %s914 = ssub.s32 1024, 1024
          %915 = vsyncadd %s905, %s914
          %s916 = smul.addr %s912, 128
          %s917 = scalar_lea.hbm %s5, %s916
          %s918 = sshll.u32 %s908, 4
          %s919 = int_to_ptr.vmem [resolvable:$true] %s918
          %924 = dma.vmem_to_hbm [thread:$0]  %s919, 1024, %s917, %s905, 128, 128, 8
        $region44: #{transition_forward.1} parent=39 // pred_fallthru
          _
      $region40: #{transition_forward.1} parent=5 // pred_fallthru
        _
      %p925 = scmp.le.s32.totalorder 2, %s14
      // Predicated region
      $region45: #{transition_forward.1} parent=5 // pred_check
        %p926 = pneg %p925
      $region46: #{transition_forward.1} parent=5 // pred_check_branch
        %928 = sbr.rel (%p926) target = $region48
      $region47: #{transition_forward.1} parent=5 // pred_region
        %s929 = ssub.s32 %s14, 2
        // Predicated region
        $region49: #{transition_forward.1} parent=47 // pred_check
          %p930 = pneg %p153
        $region50: #{transition_forward.1} parent=47 // pred_check_branch
          %932 = sbr.rel (%p930) target = $region52
        $region51: #{transition_forward.1} parent=47 // pred_region
          %s933 = sand.u32 %s138, 1
          %s934 = scalar_lea.sflag [#allocation3], %s933
          %s935 = sand.u32 %s138, 1
          %s936 = smul.addr %s935, 64
          %s937 = scalar_lea.vmem [#allocation2], %s936
          %938 = dma.done %s934, 1024
        $region52: #{transition_forward.1} parent=47 // pred_fallthru
          _
      $region48: #{transition_forward.1} parent=5 // pred_fallthru
        _
    $region6: #{transition_forward.1} parent=1 // loop_footer
      %s18 = sadd.s32 1, %s14
    $region7: #{transition_forward.1} parent=1 // loop_footer_branch
      %13 = sbr.rel target = $region3
    $region8: #{transition_forward.1} parent=1 // loop_exit
      _
    %939 = vsyncpa [#allocation3], 1
    %s940 = scalar_lea.sflag [#allocation3], 1
    %941 = vsyncpa %s940, 1

</llo_original>
